<compile_context>
chip_gen: v7x
topology: tpu7x:2x2x1
jax: 0.10.0
libtpu: 0.0.40
codegen_flags: <defaults>
</compile_context>

<pallas_src>
import functools

import jax
import jax.numpy as jnp
from jax import lax
from jax.experimental import pallas as pl
from jax.experimental.pallas import tpu as pltpu

LANE = 128                 # TPU lane width (last-dim vreg tiling)
_MAX_SPATIAL_TILE = 4096   # cap on the spatial tile (bounded unroll + VMEM)
_SINGLE_STEP_MAX = 8192    # single spatial step (no accumulator) up to this many columns


def _round_up(v, m):
    return (v + m - 1) // m * m


# ----------------------------------------------------------------------------
# Kernel
# ----------------------------------------------------------------------------
def _finalize(pooled_f32, w_ref, b_ref, feat_ref, out_ref):
    """pooled_f32: (tn, C) spatial mean. Writes features and fused FC logits."""
    feat_ref[0] = pooled_f32.astype(feat_ref.dtype)
    # FC on the MXU. Cast the (tiny) pooled activations to the weight dtype so a bf16
    # weight is never blown up into an f32 copy; accumulate in f32 regardless.
    logits = jnp.dot(pooled_f32.astype(w_ref.dtype), w_ref[...],
                     preferred_element_type=jnp.float32)
    logits = logits + b_ref[...].astype(jnp.float32)
    out_ref[0] = logits.astype(out_ref.dtype)


def _res_head_kernel(x_ref, w_ref, b_ref, feat_ref, out_ref, acc_ref=None, *,
                     hw, tiled, ragged):
    """One grid step of the fused ResHead.

    x_ref    : (tn, C, t_hw) activation tile (native dtype).
    w_ref    : (C, ncp)      FC weight (resident).
    b_ref    : (1, ncp)      FC bias   (resident).
    feat_ref : (1, tn, C)    pooled features output (resident across the spatial axis).
    out_ref  : (1, tn, ncp)  logits output          (resident across the spatial axis).
    acc_ref  : (tn, C, LANE) f32 lane-preserving partial-sum accumulator (tiled mode only).
    """
    t_hw = x_ref.shape[-1]
    n_full = t_hw // LANE
    rem = t_hw - n_full * LANE            # nonzero only in single-step mode

    if tiled:
        k = pl.program_id(1)
        base = k * t_hw                   # absolute spatial offset of this block
    else:
        k = None
        base = 0

    def load_chunk(off, width):
        # Load a lane-aligned spatial chunk, upcast to f32, mask positions >= HW.
        c = x_ref[:, :, off:off + width].astype(jnp.float32)
        if ragged:
            pos = base + off + lax.broadcasted_iota(jnp.int32, c.shape, 2)
            c = jnp.where(pos < hw, c, 0.0)
        return c

    if tiled:
        # --- partial spatial sum for this tile: pure VALU folds into (tn, C, LANE) ---
        folded = load_chunk(0, LANE)
        for j in range(1, n_full):
            folded = folded + load_chunk(j * LANE, LANE)

        @pl.when(k == 0)
        def _init():
            acc_ref[...] = jnp.zeros_like(acc_ref)

        acc_ref[...] += folded

        @pl.when(k == pl.num_programs(1) - 1)
        def _fin():
            # Single cross-lane (XLU) collapse per batch block, then fused mean + FC.
            pooled = jnp.sum(acc_ref[...], axis=-1) * (1.0 / hw)
            _finalize(pooled, w_ref, b_ref, feat_ref, out_ref)
    else:
        # --- single spatial step: pool + FC in one shot, no accumulator needed ---
        if n_full > 0:
            folded = load_chunk(0, LANE)
            for j in range(1, n_full):
                folded = folded + load_chunk(j * LANE, LANE)
            pooled = jnp.sum(folded, axis=-1)
            if rem:
                pooled = pooled + jnp.sum(load_chunk(n_full * LANE, rem), axis=-1)
        else:
            pooled = jnp.sum(load_chunk(0, rem), axis=-1)
        pooled = pooled * (1.0 / hw)
        _finalize(pooled, w_ref, b_ref, feat_ref, out_ref)


# ----------------------------------------------------------------------------
# Planning: batch blocking, spatial tile, VMEM limit (generation-aware)
# ----------------------------------------------------------------------------
def _plan(N, C, HW, ncp, x_itemsize, w_itemsize, out_itemsize, spatial_tile):
    # Batch blocking: a leading "parallel" grid axis (feeds both v7x TensorCores) while
    # keeping each block's activation DMA a reasonably large contiguous slab.
    n_b = 1
    for cand in (8, 4, 2):
        if N % cand == 0 and (N // cand) * C * HW * x_itemsize >= (1 << 19):
            n_b = cand
            break
    if n_b == 1 and N >= 2 and N % 2 == 0:
        n_b = 2
    tn = N // n_b

    # VMEM budget per generation (v5e/v6e: 128 MiB physical, v7x: 64 MiB per core).
    try:
        vmem_cap = pltpu.get_tpu_info().vmem_capacity_bytes
    except Exception:
        vmem_cap = 64 << 20                                 # conservative fallback (v7x)
    resident = 2 * (C * ncp + ncp) * w_itemsize             # FC weight + bias (double-buffered)
    resident += 2 * (tn * C + tn * ncp) * out_itemsize      # resident outputs
    resident += tn * C * LANE * 4                           # f32 partial-sum accumulator
    act_budget = max(int(0.45 * vmem_cap) - resident, 2 * tn * C * LANE * x_itemsize)

    per_col = 2 * tn * C * x_itemsize                       # double-buffered bytes / spatial col
    max_cols = max(LANE, act_budget // per_col)

    if spatial_tile is not None:                            # explicit override (tests / tuning)
        t_hw = min(_round_up(spatial_tile, LANE), _round_up(HW, LANE))
        if t_hw >= HW:
            t_hw = HW
    elif HW <= min(max_cols, _SINGLE_STEP_MAX):
        t_hw = HW                                           # single spatial step (full extent)
    else:
        t_hw = max(LANE, min((max_cols // LANE) * LANE, _MAX_SPATIAL_TILE))
    n_k = -(-HW // t_hw)

    vmem_limit = min(int(0.9 * vmem_cap), 128 << 20)
    return n_b, tn, t_hw, n_k, vmem_limit


# ----------------------------------------------------------------------------
# Wrapper (glue: free reshape + tiny weight pad only; all compute is in-kernel)
# ----------------------------------------------------------------------------
def res_head_forward(x, w, b, *, spatial_tile=None):
    """Fused ResHead forward.

    x: (N, C, H, W) activations (PyTorch NCHW layout), any float dtype.
    w: (C, nc)      FC weight laid out so logits = pooled @ w + b  (i.e. torch fc.weight.T).
    b: (nc,)        FC bias.
    Returns (features (N, C), logits (N, nc)) in x.dtype.
    """
    N, C, H, W = x.shape
    nc = w.shape[1]
    HW = H * W
    out_dtype = x.dtype

    # Lane-dense logits: pad the class dim to a multiple of 128 (tiny, one-off).
    ncp = _round_up(nc, LANE)
    w_p = jnp.pad(w, ((0, 0), (0, ncp - nc)))
    b_p = jnp.pad(b, (0, ncp - nc)).reshape(1, ncp)

    # (N, C, H, W) -> (N, C, H*W): contiguous reshape, no data movement, native dtype.
    x3 = x.reshape(N, C, HW)

    n_b, tn, t_hw, n_k, vmem_limit = _plan(
        N, C, HW, ncp, x.dtype.itemsize, w_p.dtype.itemsize,
        jnp.dtype(out_dtype).itemsize, spatial_tile)
    tiled = n_k > 1
    ragged = tiled and (HW % t_hw != 0)

    kernel = functools.partial(_res_head_kernel, hw=HW, tiled=tiled, ragged=ragged)

    if tiled:
        grid = (n_b, n_k)
        x_spec = pl.BlockSpec((tn, C, t_hw), lambda i, k: (i, 0, k))
        w_spec = pl.BlockSpec((C, ncp), lambda i, k: (0, 0))
        b_spec = pl.BlockSpec((1, ncp), lambda i, k: (0, 0))
        o_spec = (pl.BlockSpec((1, tn, C), lambda i, k: (i, 0, 0)),
                  pl.BlockSpec((1, tn, ncp), lambda i, k: (i, 0, 0)))
        scratch = [pltpu.VMEM((tn, C, LANE), jnp.float32)]
        semantics = ("parallel", "arbitrary")
    else:
        grid = (n_b,)
        x_spec = pl.BlockSpec((tn, C, t_hw), lambda i: (i, 0, 0))
        w_spec = pl.BlockSpec((C, ncp), lambda i: (0, 0))
        b_spec = pl.BlockSpec((1, ncp), lambda i: (0, 0))
        o_spec = (pl.BlockSpec((1, tn, C), lambda i: (i, 0, 0)),
                  pl.BlockSpec((1, tn, ncp), lambda i: (i, 0, 0)))
        scratch = []
        semantics = ("parallel",)

    feats, logits = pl.pallas_call(
        kernel,
        out_shape=(jax.ShapeDtypeStruct((n_b, tn, C), out_dtype),
                   jax.ShapeDtypeStruct((n_b, tn, ncp), out_dtype)),
        grid=grid,
        in_specs=[x_spec, w_spec, b_spec],
        out_specs=o_spec,
        scratch_shapes=scratch,
        compiler_params=pltpu.CompilerParams(
            dimension_semantics=semantics,
            vmem_limit_bytes=vmem_limit),
    )(x3, w_p, b_p)

    feats = feats.reshape(N, C)
    logits = logits.reshape(N, ncp)[:, :nc]
    return feats, logits


# ----------------------------------------------------------------------------
if __name__ == "__main__":
    def reference(x, w, b):
        pooled = jnp.mean(x.astype(jnp.float32), axis=(2, 3))   # AdaptiveAvgPool2d((1,1)) + flatten
        return pooled, pooled @ w.astype(jnp.float32) + b.astype(jnp.float32)

    def check(name, N, C, H, W, nc, key, spatial_tile=None):
        kx, kw, kb = jax.random.split(key, 3)
        x = jax.random.normal(kx, (N, C, H, W), jnp.float32)     # NCHW like PyTorch
        w = 0.1 * jax.random.normal(kw, (C, nc), jnp.float32)    # torch fc.weight.T
        b = 0.1 * jax.random.normal(kb, (nc,), jnp.float32)
        feats, logits = res_head_forward(x, w, b, spatial_tile=spatial_tile)
        feats = jax.block_until_ready(feats)
        logits = jax.block_until_ready(logits)
        feats_ref, logits_ref = reference(x, w, b)
        assert feats.shape == (N, C), (name, feats.shape)
        assert logits.shape == (N, nc), (name, logits.shape)
        assert jnp.allclose(feats, feats_ref, rtol=1e-4, atol=1e-5), \
            (name, float(jnp.max(jnp.abs(feats - feats_ref))))
        assert jnp.allclose(logits, logits_ref, rtol=1e-4, atol=1e-5), \
            (name, float(jnp.max(jnp.abs(logits - logits_ref))))

    key = jax.random.PRNGKey(0)
    k1, k2, k3 = jax.random.split(key, 3)
    # (a) small default config -> single spatial step, 2-way parallel batch axis.
    check("single_step", N=4, C=64, H=32, W=32, nc=16, key=k1)
    # (b) forced spatial tiling with a ragged last tile (masked in-kernel).
    check("tiled_ragged", N=2, C=16, H=40, W=40, nc=16, key=k2, spatial_tile=256)
    # (c) canonical ResNet-head spatial size (7x7 = 49, not a multiple of 128).
    check("hw49", N=3, C=8, H=7, W=7, nc=10, key=k3)

    print("KERNEL_OK")
</pallas_src>

<mosaic_0001>
module attributes {stable_mosaic.version = 11 : i64} {
  func.func @_res_head_kernel(%arg0: i32, %arg1: memref<2x64x1024xf32, #tpu.memory_space<vmem>>, %arg2: memref<64x128xf32, #tpu.memory_space<vmem>>, %arg3: memref<1x128xf32, #tpu.memory_space<vmem>>, %arg4: memref<1x2x64xf32, #tpu.memory_space<vmem>>, %arg5: memref<1x2x128xf32, #tpu.memory_space<vmem>>) attributes {dimension_semantics = [#tpu.dimension_semantics<parallel>], iteration_bounds = array<i64: 2>, scalar_prefetch = 0 : i64, scratch_operands = 0 : i64, tpu.core_type = #tpu.core_type<tc>, window_params = [{transform_indices = @transform_0, window_bounds = array<i64: 2, 64, 1024>}, {pipeline_mode = #tpu.pipeline_mode<synchronous>, transform_indices = @transform_1, window_bounds = array<i64: 64, 128>}, {pipeline_mode = #tpu.pipeline_mode<synchronous>, transform_indices = @transform_2, window_bounds = array<i64: 1, 128>}, {transform_indices = @transform_3, window_bounds = array<i64: 1, 2, 64>}, {transform_indices = @transform_4, window_bounds = array<i64: 1, 2, 128>}]} {
    %c0 = arith.constant 0 : index
    %c0_0 = arith.constant 0 : index
    %c0_1 = arith.constant 0 : index
    %0 = vector.load %arg1[%c0, %c0_0, %c0_1] : memref<2x64x1024xf32, #tpu.memory_space<vmem>>, vector<2x64x128xf32>
    %c0_2 = arith.constant 0 : index
    %c0_3 = arith.constant 0 : index
    %c128 = arith.constant 128 : index
    %1 = vector.load %arg1[%c0_2, %c0_3, %c128] : memref<2x64x1024xf32, #tpu.memory_space<vmem>>, vector<2x64x128xf32>
    %2 = arith.addf %0, %1 : vector<2x64x128xf32>
    %c0_4 = arith.constant 0 : index
    %c0_5 = arith.constant 0 : index
    %c256 = arith.constant 256 : index
    %3 = vector.load %arg1[%c0_4, %c0_5, %c256] : memref<2x64x1024xf32, #tpu.memory_space<vmem>>, vector<2x64x128xf32>
    %4 = arith.addf %2, %3 : vector<2x64x128xf32>
    %c0_6 = arith.constant 0 : index
    %c0_7 = arith.constant 0 : index
    %c384 = arith.constant 384 : index
    %5 = vector.load %arg1[%c0_6, %c0_7, %c384] : memref<2x64x1024xf32, #tpu.memory_space<vmem>>, vector<2x64x128xf32>
    %6 = arith.addf %4, %5 : vector<2x64x128xf32>
    %c0_8 = arith.constant 0 : index
    %c0_9 = arith.constant 0 : index
    %c512 = arith.constant 512 : index
    %7 = vector.load %arg1[%c0_8, %c0_9, %c512] : memref<2x64x1024xf32, #tpu.memory_space<vmem>>, vector<2x64x128xf32>
    %8 = arith.addf %6, %7 : vector<2x64x128xf32>
    %c0_10 = arith.constant 0 : index
    %c0_11 = arith.constant 0 : index
    %c640 = arith.constant 640 : index
    %9 = vector.load %arg1[%c0_10, %c0_11, %c640] : memref<2x64x1024xf32, #tpu.memory_space<vmem>>, vector<2x64x128xf32>
    %10 = arith.addf %8, %9 : vector<2x64x128xf32>
    %c0_12 = arith.constant 0 : index
    %c0_13 = arith.constant 0 : index
    %c768 = arith.constant 768 : index
    %11 = vector.load %arg1[%c0_12, %c0_13, %c768] : memref<2x64x1024xf32, #tpu.memory_space<vmem>>, vector<2x64x128xf32>
    %12 = arith.addf %10, %11 : vector<2x64x128xf32>
    %c0_14 = arith.constant 0 : index
    %c0_15 = arith.constant 0 : index
    %c896 = arith.constant 896 : index
    %13 = vector.load %arg1[%c0_14, %c0_15, %c896] : memref<2x64x1024xf32, #tpu.memory_space<vmem>>, vector<2x64x128xf32>
    %14 = arith.addf %12, %13 : vector<2x64x128xf32>
    %cst = arith.constant dense<0.000000e+00> : vector<2x64xf32>
    %15 = vector.multi_reduction <add>, %14, %cst [2] : vector<2x64x128xf32> to vector<2x64xf32>
    %cst_16 = arith.constant 9.765625E-4 : f32
    %16 = vector.broadcast %cst_16 : f32 to vector<2x64xf32>
    %17 = arith.mulf %15, %16 : vector<2x64xf32>
    %c0_17 = arith.constant 0 : index
    %c0_18 = arith.constant 0 : index
    %c0_19 = arith.constant 0 : index
    %18 = vector.load %arg4[%c0_17, %c0_18, %c0_19] : memref<1x2x64xf32, #tpu.memory_space<vmem>>, vector<1x2x64xf32>
    %19 = vector.shape_cast %18 : vector<1x2x64xf32> to vector<2x64xf32>
    %20 = vector.shape_cast %17 : vector<2x64xf32> to vector<1x2x64xf32>
    tpu.vector_store %arg4[%c0_17, %c0_18, %c0_19], %20 {strides = array<i32>} : memref<1x2x64xf32, #tpu.memory_space<vmem>>, vector<1x2x64xf32>,
    %c0_20 = arith.constant 0 : index
    %c0_21 = arith.constant 0 : index
    %21 = vector.load %arg2[%c0_20, %c0_21] : memref<64x128xf32, #tpu.memory_space<vmem>>, vector<64x128xf32>
    %cst_22 = arith.constant dense<0.000000e+00> : vector<2x128xf32>
    %22 = tpu.matmul %17, %21, %cst_22 {dimension_numbers = #tpu.dot_dimension_numbers<[1], [0], [0], [1], [0, 0, 1, 1], [], []>} : vector<2x64xf32>, vector<64x128xf32>, vector<2x128xf32> -> vector<2x128xf32>
    %c0_23 = arith.constant 0 : index
    %c0_24 = arith.constant 0 : index
    %23 = vector.load %arg3[%c0_23, %c0_24] : memref<1x128xf32, #tpu.memory_space<vmem>>, vector<1x128xf32>
    %24 = vector.broadcast %23 : vector<1x128xf32> to vector<2x128xf32>
    %25 = arith.addf %22, %24 : vector<2x128xf32>
    %c0_25 = arith.constant 0 : index
    %c0_26 = arith.constant 0 : index
    %c0_27 = arith.constant 0 : index
    %26 = vector.load %arg5[%c0_25, %c0_26, %c0_27] : memref<1x2x128xf32, #tpu.memory_space<vmem>>, vector<1x2x128xf32>
    %27 = vector.shape_cast %26 : vector<1x2x128xf32> to vector<2x128xf32>
    %28 = vector.shape_cast %25 : vector<2x128xf32> to vector<1x2x128xf32>
    tpu.vector_store %arg5[%c0_25, %c0_26, %c0_27], %28 {strides = array<i32>} : memref<1x2x128xf32, #tpu.memory_space<vmem>>, vector<1x2x128xf32>,
    return
  }
  func.func @transform_0(%arg0: i32) -> (i32, i32, i32) {
    %c0_i32 = arith.constant 0 : i32
    %c0_i32_0 = arith.constant 0 : i32
    %c0_i32_1 = arith.constant 0 : i32
    return %arg0, %c0_i32, %c0_i32_0 : i32, i32, i32
  }
  func.func @transform_1(%arg0: i32) -> (i32, i32) {
    %c0_i32 = arith.constant 0 : i32
    %c0_i32_0 = arith.constant 0 : i32
    %c0_i32_1 = arith.constant 0 : i32
    return %c0_i32, %c0_i32_0 : i32, i32
  }
  func.func @transform_2(%arg0: i32) -> (i32, i32) {
    %c0_i32 = arith.constant 0 : i32
    %c0_i32_0 = arith.constant 0 : i32
    %c0_i32_1 = arith.constant 0 : i32
    return %c0_i32, %c0_i32_0 : i32, i32
  }
  func.func @transform_3(%arg0: i32) -> (i32, i32, i32) {
    %c0_i32 = arith.constant 0 : i32
    %c0_i32_0 = arith.constant 0 : i32
    %c0_i32_1 = arith.constant 0 : i32
    return %arg0, %c0_i32, %c0_i32_0 : i32, i32, i32
  }
  func.func @transform_4(%arg0: i32) -> (i32, i32, i32) {
    %c0_i32 = arith.constant 0 : i32
    %c0_i32_0 = arith.constant 0 : i32
    %c0_i32_1 = arith.constant 0 : i32
    return %arg0, %c0_i32, %c0_i32_0 : i32, i32, i32
  }
}

</mosaic_0001>

<llo_original>
// kernel: tpu_custom_call.1
$region0: #{tpu_custom_call.1}
  #allocation0 [shape = 'u32[]', space=smem, size = 0x4, offset = 0x4, fixed_abs, tag = 'smem constant byte address 0x4 - core index']
  #allocation1 [shape = 'u32[144,128]{1,0:T(1,128)}', space=vmem, size = 0x12000, scoped, tag = 'internal scratch']
  %s0 = inlined_call_operand.hbm [shape: f32[4,64,1024], index: 0, kind: input, shape index: {}]
  %s1 = inlined_call_operand.hbm [shape: f32[64,128], index: 1, kind: input, shape index: {}]
  %s2 = inlined_call_operand.vmem [shape: f32[1,128], index: 2, kind: input, shape index: {}]
  %s3 = inlined_call_operand.hbm [shape: f32[2,2,64], index: 3, kind: output, shape index: {0}]
  %s4 = inlined_call_operand.hbm [shape: f32[2,2,128], index: 4, kind: output, shape index: {1}]
  %5 = xla_tuple %s3, %s4
  %s6 = sld [smem:[#allocation0]]
  $region61: #{tpu_custom_call.1} parent=0
    _
  %s8 = ssub.s32 1, %s6
  %s9 = scalar_select 0, %s8, %s6
  $region1: #{tpu_custom_call.1} parent=0
    #allocation2 [shape = 'u8[1048576]{0}', space=vmem, size = 0x100000, scoped, tag = 'input window, operand 0']
    #allocation3 [shape = 's32[2]{0}', space=sflag, size = 0x8, scoped, tag = 'scoped memory for tpu_custom_call.1']
    #allocation4 [shape = 's32[2]{0}', space=sflag, size = 0x8, scoped, tag = 'scoped memory for tpu_custom_call.1']
    #allocation5 [shape = 'u8[32768]{0}', space=vmem, size = 0x8000, scoped, tag = 'input window, operand 1, single buffered']
    #allocation6 [shape = 's32[1]{0}', space=sflag, size = 0x4, scoped, tag = 'scoped memory for tpu_custom_call.1']
    #allocation7 [shape = 'u8[2048]{0}', space=vmem, size = 0x800, scoped, tag = 'output window, operand 0']
    #allocation8 [shape = 'u8[2048]{0}', space=vmem, size = 0x800, scoped, tag = 'output window, operand 1']
    #allocation9 [shape = 's32[2]{0}', space=sflag, size = 0x8, scoped, tag = 'scoped memory for tpu_custom_call.1']
    %10 = vsyncpa [#allocation3], 0
    %s11 = scalar_lea.sflag [#allocation3], 1
    %12 = vsyncpa %s11, 0
    %13 = vsyncpa [#allocation6], 0
    %14 = vsyncpa [#allocation4], 0
    %s15 = scalar_lea.sflag [#allocation4], 1
    %16 = vsyncpa %s15, 0
    %17 = vsyncpa [#allocation9], 0
    %s18 = scalar_lea.sflag [#allocation9], 1
    %19 = vsyncpa %s18, 0
    loop: start=0, step=1, limit=4
    $region2: #{tpu_custom_call.1} parent=1 // loop_pre_header
      _
    $region3: #{tpu_custom_call.1} parent=1 // loop_header
      %s21 = sphi 0, %s25
      %p22 = scmp.ge.s32.totalorder %s21, 4
      %s31 = sphi 0, %s33
      %s34 = sphi 0, %s31
      %s35 = sphi 0, %s34
      %s51 = sphi 0, %s35
      %s55 = sphi 0, %s55
      %s57 = sphi 0, %s55
      %s58 = sphi 0, %s57
      %s72 = sphi 0, %s58
      %s76 = sphi 0, %s76
      %s78 = sphi 0, %s76
      %s79 = sphi 0, %s78
      %s93 = sphi 0, %s79
      %s99 = sphi 0, %s101
      %s102 = sphi 0, %s99
      %s103 = sphi 0, %s102
      %s119 = sphi 0, %s103
      %s125 = sphi 0, %s127
      %s128 = sphi 0, %s125
      %s129 = sphi 0, %s128
      %s145 = sphi 0, %s129
    $region4: #{tpu_custom_call.1} parent=1 // loop_header_branch
      %24 = sbr.rel (%p22) target = $region8
    $region5: #{tpu_custom_call.1} parent=1 // loop_body
      %s26 = ssub.s32 %s21, 1
      %s27 = ssub.s32 %s21, 2
      %s28 = sadd.s32 %s21, 1
      %s29 = ssub.s32 %s21, %s28
      %p30 = scmp.eq.s32.totalorder %s29, 0
      %s32 = sadd.s32 %s31, 1
      %s33 = scalar_select %p30, %s31, %s32
      %p36 = pneg %p30
      %p37 = scmp.eq.s32.totalorder %s21, 1
      %p38 = por %p36, %p37
      %p39 = scmp.ne.s32.totalorder %s31, %s34
      %p40 = scmp.eq.s32.totalorder %s21, 0
      %p41 = por %p39, %p40
      %p42 = scmp.ne.s32.totalorder %s31, %s34
      %p43 = scmp.eq.s32.totalorder %s26, 1
      %p44 = por %p42, %p43
      %p45 = scmp.ne.s32.totalorder %s34, %s35
      %p46 = scmp.eq.s32.totalorder %s26, 0
      %p47 = por %p45, %p46
      %p48 = scmp.ne.s32.totalorder %s34, %s35
      %p49 = scmp.eq.s32.totalorder %s27, 1
      %p50 = por %p48, %p49
      %p52 = scmp.ne.s32.totalorder %s35, %s51
      %p53 = scmp.eq.s32.totalorder %s27, 0
      %p54 = por %p52, %p53
      %s56 = sadd.s32 %s55, 1
      %p59 = scmp.eq.s32.totalorder %s21, 1
      %p60 = scmp.ne.s32.totalorder %s55, %s57
      %p61 = scmp.eq.s32.totalorder %s21, 0
      %p62 = por %p60, %p61
      %p63 = scmp.ne.s32.totalorder %s55, %s57
      %p64 = scmp.eq.s32.totalorder %s26, 1
      %p65 = por %p63, %p64
      %p66 = scmp.ne.s32.totalorder %s57, %s58
      %p67 = scmp.eq.s32.totalorder %s26, 0
      %p68 = por %p66, %p67
      %p69 = scmp.ne.s32.totalorder %s57, %s58
      %p70 = scmp.eq.s32.totalorder %s27, 1
      %p71 = por %p69, %p70
      %p73 = scmp.ne.s32.totalorder %s58, %s72
      %p74 = scmp.eq.s32.totalorder %s27, 0
      %p75 = por %p73, %p74
      %s77 = sadd.s32 %s76, 1
      %p80 = scmp.eq.s32.totalorder %s21, 1
      %p81 = scmp.ne.s32.totalorder %s76, %s78
      %p82 = scmp.eq.s32.totalorder %s21, 0
      %p83 = por %p81, %p82
      %p84 = scmp.ne.s32.totalorder %s76, %s78
      %p85 = scmp.eq.s32.totalorder %s26, 1
      %p86 = por %p84, %p85
      %p87 = scmp.ne.s32.totalorder %s78, %s79
      %p88 = scmp.eq.s32.totalorder %s26, 0
      %p89 = por %p87, %p88
      %p90 = scmp.ne.s32.totalorder %s78, %s79
      %p91 = scmp.eq.s32.totalorder %s27, 1
      %p92 = por %p90, %p91
      %p94 = scmp.ne.s32.totalorder %s79, %s93
      %p95 = scmp.eq.s32.totalorder %s27, 0
      %p96 = por %p94, %p95
      %s97 = ssub.s32 %s21, %s28
      %p98 = scmp.eq.s32.totalorder %s97, 0
      %s100 = sadd.s32 %s99, 1
      %s101 = scalar_select %p98, %s99, %s100
      %p104 = pneg %p98
      %p105 = scmp.eq.s32.totalorder %s21, 1
      %p106 = por %p104, %p105
      %p107 = scmp.ne.s32.totalorder %s99, %s102
      %p108 = scmp.eq.s32.totalorder %s21, 0
      %p109 = por %p107, %p108
      %p110 = scmp.ne.s32.totalorder %s99, %s102
      %p111 = scmp.eq.s32.totalorder %s26, 1
      %p112 = por %p110, %p111
      %p113 = scmp.ne.s32.totalorder %s102, %s103
      %p114 = scmp.eq.s32.totalorder %s26, 0
      %p115 = por %p113, %p114
      %p116 = scmp.ne.s32.totalorder %s102, %s103
      %p117 = scmp.eq.s32.totalorder %s27, 1
      %p118 = por %p116, %p117
      %p120 = scmp.ne.s32.totalorder %s103, %s119
      %p121 = scmp.eq.s32.totalorder %s27, 0
      %p122 = por %p120, %p121
      %s123 = ssub.s32 %s21, %s28
      %p124 = scmp.eq.s32.totalorder %s123, 0
      %s126 = sadd.s32 %s125, 1
      %s127 = scalar_select %p124, %s125, %s126
      %p130 = pneg %p124
      %p131 = scmp.eq.s32.totalorder %s21, 1
      %p132 = por %p130, %p131
      %p133 = scmp.ne.s32.totalorder %s125, %s128
      %p134 = scmp.eq.s32.totalorder %s21, 0
      %p135 = por %p133, %p134
      %p136 = scmp.ne.s32.totalorder %s125, %s128
      %p137 = scmp.eq.s32.totalorder %s26, 1
      %p138 = por %p136, %p137
      %p139 = scmp.ne.s32.totalorder %s128, %s129
      %p140 = scmp.eq.s32.totalorder %s26, 0
      %p141 = por %p139, %p140
      %p142 = scmp.ne.s32.totalorder %s128, %s129
      %p143 = scmp.eq.s32.totalorder %s27, 1
      %p144 = por %p142, %p143
      %p146 = scmp.ne.s32.totalorder %s129, %s145
      %p147 = scmp.eq.s32.totalorder %s27, 0
      %p148 = por %p146, %p147
      %p149 = scmp.le.s32.totalorder 1, %s21
      %p150 = scmp.lt.s32.totalorder %s21, 3
      %p151 = pnand %p149, %p150
      %p152 = pneg %p151
      // Predicated region
      $region9: #{tpu_custom_call.1} parent=5 // pred_check
        _
      $region10: #{tpu_custom_call.1} parent=5 // pred_check_branch
        %154 = sbr.rel (%p151) target = $region12
      $region11: #{tpu_custom_call.1} parent=5 // pred_region
        %s155 = ssub.s32 %s21, 1
        // Predicated region
        $region13: #{tpu_custom_call.1} parent=11 // pred_check
          %p156 = pneg %p68
        $region14: #{tpu_custom_call.1} parent=11 // pred_check_branch
          %158 = sbr.rel (%p156) target = $region16
        $region15: #{tpu_custom_call.1} parent=11 // pred_region
          %s160 = ssub.s32 1024, 1024
          %161 = vsyncadd [#allocation6], %s160
          %s162 = sshll.u32 [#allocation5], 4
          %s163 = int_to_ptr.vmem [resolvable:$true] %s162
          %168 = dma.hbm_to_vmem [thread:$0]  %s1, 1024, %s163, [#allocation6], 128, 128, 8
        $region16: #{tpu_custom_call.1} parent=11 // pred_fallthru
          _
        // Predicated region
        $region17: #{tpu_custom_call.1} parent=11 // pred_check
          %p169 = pneg %p89
        $region18: #{tpu_custom_call.1} parent=11 // pred_check_branch
          %171 = sbr.rel (%p169) target = $region20
        $region19: #{tpu_custom_call.1} parent=11 // pred_region
          _
        $region20: #{tpu_custom_call.1} parent=11 // pred_fallthru
          _
      $region12: #{tpu_custom_call.1} parent=5 // pred_fallthru
        _
      %p172 = scmp.lt.s32.totalorder %s21, 2
      // Predicated region
      $region21: #{tpu_custom_call.1} parent=5 // pred_check
        %p173 = pneg %p172
      $region22: #{tpu_custom_call.1} parent=5 // pred_check_branch
        %175 = sbr.rel (%p173) target = $region24
      $region23: #{tpu_custom_call.1} parent=5 // pred_region
        // Predicated region
        $region25: #{tpu_custom_call.1} parent=23 // pred_check
          %p176 = pneg %p41
        $region26: #{tpu_custom_call.1} parent=23 // pred_check_branch
          %178 = sbr.rel (%p176) target = $region28
        $region27: #{tpu_custom_call.1} parent=23 // pred_region
          %s179 = sand.u32 %s31, 1
          %s180 = scalar_lea.sflag [#allocation3], %s179
          %s181 = sand.u32 %s31, 1
          %s182 = smul.addr %s181, 1024
          %s183 = scalar_lea.vmem [#allocation2], %s182
          %s184 = smul.u32 2, %s21
          %s186 = ssub.s32 16384, 16384
          %187 = vsyncadd %s180, %s186
          %s188 = smul.addr %s184, 64
          %s189 = smul.addr %s188, 128
          %s190 = scalar_lea.hbm %s0, %s189
          %s191 = sshll.u32 %s183, 4
          %s192 = int_to_ptr.vmem [resolvable:$true] %s191
          %197 = dma.hbm_to_vmem [thread:$0]  %s190, 16384, %s192, %s180, 1024, 1024, 64
        $region28: #{tpu_custom_call.1} parent=23 // pred_fallthru
          _
      $region24: #{tpu_custom_call.1} parent=5 // pred_fallthru
        _
      %p198 = scmp.le.s32.totalorder 1, %s21
      %p199 = scmp.lt.s32.totalorder %s21, 3
      %p200 = pnand %p198, %p199
      %p201 = pneg %p200
      // Predicated region
      $region29: #{tpu_custom_call.1} parent=5 // pred_check
        _
      $region30: #{tpu_custom_call.1} parent=5 // pred_check_branch
        %203 = sbr.rel (%p200) target = $region32
      $region31: #{tpu_custom_call.1} parent=5 // pred_region
        %s204 = ssub.s32 %s21, 1
        %s205 = sand.u32 %s34, 1
        %s206 = scalar_lea.sflag [#allocation3], %s205
        %s207 = sand.u32 %s34, 1
        %s208 = smul.addr %s207, 1024
        %s209 = scalar_lea.vmem [#allocation2], %s208
        // Predicated region
        $region33: #{tpu_custom_call.1} parent=31 // pred_check
          %p210 = pneg %p47
        $region34: #{tpu_custom_call.1} parent=31 // pred_check_branch
          %212 = sbr.rel (%p210) target = $region36
        $region35: #{tpu_custom_call.1} parent=31 // pred_region
          %213 = dma.done %s206, 16384
        $region36: #{tpu_custom_call.1} parent=31 // pred_fallthru
          _
        // Predicated region
        $region37: #{tpu_custom_call.1} parent=31 // pred_check
          %p214 = pneg %p68
        $region38: #{tpu_custom_call.1} parent=31 // pred_check_branch
          %216 = sbr.rel (%p214) target = $region40
        $region39: #{tpu_custom_call.1} parent=31 // pred_region
          %217 = dma.done [#allocation6], 1024
        $region40: #{tpu_custom_call.1} parent=31 // pred_fallthru
          _
        %s218 = sand.u32 %s34, 1
        %s219 = scalar_lea.sflag [#allocation3], %s218
        %s220 = sand.u32 %s34, 1
        %s221 = smul.addr %s220, 1024
        %s222 = scalar_lea.vmem [#allocation2], %s221
        %p223 = pneg %p47
        %p224 = pneg %p44
        %p225 = pneg %p68
        %p226 = pneg %p65
        %p227 = pneg %p89
        %p228 = pneg %p86
        %p229 = pneg %p115
        %p230 = pneg %p112
        %s231 = sand.u32 %s102, 1
        %s232 = scalar_lea.sflag [#allocation4], %s231
        %s233 = sand.u32 %s102, 1
        %s234 = smul.addr %s233, 2
        %s235 = scalar_lea.vmem [#allocation7], %s234
        %p236 = pneg %p141
        %p237 = pneg %p138
        %s238 = sand.u32 %s128, 1
        %s239 = scalar_lea.sflag [#allocation9], %s238
        %s240 = sand.u32 %s128, 1
        %s241 = smul.addr %s240, 2
        %s242 = scalar_lea.vmem [#allocation8], %s241
        %s243 = smul.u32 2, %s26
        %v244 = vld [vmem:[%s209] sm:$0xff]
        %v245 = vld [vmem:[%s209 + $0x40] sm:$0xff]
        %v246 = vld [vmem:[%s209 + $0x80] sm:$0xff]
        %v247 = vld [vmem:[%s209 + $0xc0] sm:$0xff]
        %v248 = vld [vmem:[%s209 + $0x100] sm:$0xff]
        %v249 = vld [vmem:[%s209 + $0x140] sm:$0xff]
        %v250 = vld [vmem:[%s209 + $0x180] sm:$0xff]
        %v251 = vld [vmem:[%s209 + $0x1c0] sm:$0xff]
        %v252 = vld [vmem:[%s209 + $0x200] sm:$0xff]
        %v253 = vld [vmem:[%s209 + $0x240] sm:$0xff]
        %v254 = vld [vmem:[%s209 + $0x280] sm:$0xff]
        %v255 = vld [vmem:[%s209 + $0x2c0] sm:$0xff]
        %v256 = vld [vmem:[%s209 + $0x300] sm:$0xff]
        %v257 = vld [vmem:[%s209 + $0x340] sm:$0xff]
        %v258 = vld [vmem:[%s209 + $0x380] sm:$0xff]
        %v259 = vld [vmem:[%s209 + $0x3c0] sm:$0xff]
        %v260 = vld [vmem:[%s209 + $0x8] sm:$0xff]
        %v261 = vld [vmem:[%s209 + $0x48] sm:$0xff]
        %v262 = vld [vmem:[%s209 + $0x88] sm:$0xff]
        %v263 = vld [vmem:[%s209 + $0xc8] sm:$0xff]
        %v264 = vld [vmem:[%s209 + $0x108] sm:$0xff]
        %v265 = vld [vmem:[%s209 + $0x148] sm:$0xff]
        %v266 = vld [vmem:[%s209 + $0x188] sm:$0xff]
        %v267 = vld [vmem:[%s209 + $0x1c8] sm:$0xff]
        %v268 = vld [vmem:[%s209 + $0x208] sm:$0xff]
        %v269 = vld [vmem:[%s209 + $0x248] sm:$0xff]
        %v270 = vld [vmem:[%s209 + $0x288] sm:$0xff]
        %v271 = vld [vmem:[%s209 + $0x2c8] sm:$0xff]
        %v272 = vld [vmem:[%s209 + $0x308] sm:$0xff]
        %v273 = vld [vmem:[%s209 + $0x348] sm:$0xff]
        %v274 = vld [vmem:[%s209 + $0x388] sm:$0xff]
        %v275 = vld [vmem:[%s209 + $0x3c8] sm:$0xff]
        %v276 = vadd.f32 %v244, %v260
        %v277 = vadd.f32 %v245, %v261
        %v278 = vadd.f32 %v246, %v262
        %v279 = vadd.f32 %v247, %v263
        %v280 = vadd.f32 %v248, %v264
        %v281 = vadd.f32 %v249, %v265
        %v282 = vadd.f32 %v250, %v266
        %v283 = vadd.f32 %v251, %v267
        %v284 = vadd.f32 %v252, %v268
        %v285 = vadd.f32 %v253, %v269
        %v286 = vadd.f32 %v254, %v270
        %v287 = vadd.f32 %v255, %v271
        %v288 = vadd.f32 %v256, %v272
        %v289 = vadd.f32 %v257, %v273
        %v290 = vadd.f32 %v258, %v274
        %v291 = vadd.f32 %v259, %v275
        %v292 = vld [vmem:[%s209 + $0x10] sm:$0xff]
        %v293 = vld [vmem:[%s209 + $0x50] sm:$0xff]
        %v294 = vld [vmem:[%s209 + $0x90] sm:$0xff]
        %v295 = vld [vmem:[%s209 + $0xd0] sm:$0xff]
        %v296 = vld [vmem:[%s209 + $0x110] sm:$0xff]
        %v297 = vld [vmem:[%s209 + $0x150] sm:$0xff]
        %v298 = vld [vmem:[%s209 + $0x190] sm:$0xff]
        %v299 = vld [vmem:[%s209 + $0x1d0] sm:$0xff]
        %v300 = vld [vmem:[%s209 + $0x210] sm:$0xff]
        %v301 = vld [vmem:[%s209 + $0x250] sm:$0xff]
        %v302 = vld [vmem:[%s209 + $0x290] sm:$0xff]
        %v303 = vld [vmem:[%s209 + $0x2d0] sm:$0xff]
        %v304 = vld [vmem:[%s209 + $0x310] sm:$0xff]
        %v305 = vld [vmem:[%s209 + $0x350] sm:$0xff]
        %v306 = vld [vmem:[%s209 + $0x390] sm:$0xff]
        %v307 = vld [vmem:[%s209 + $0x3d0] sm:$0xff]
        %v308 = vadd.f32 %v276, %v292
        %v309 = vadd.f32 %v277, %v293
        %v310 = vadd.f32 %v278, %v294
        %v311 = vadd.f32 %v279, %v295
        %v312 = vadd.f32 %v280, %v296
        %v313 = vadd.f32 %v281, %v297
        %v314 = vadd.f32 %v282, %v298
        %v315 = vadd.f32 %v283, %v299
        %v316 = vadd.f32 %v284, %v300
        %v317 = vadd.f32 %v285, %v301
        %v318 = vadd.f32 %v286, %v302
        %v319 = vadd.f32 %v287, %v303
        %v320 = vadd.f32 %v288, %v304
        %v321 = vadd.f32 %v289, %v305
        %v322 = vadd.f32 %v290, %v306
        %v323 = vadd.f32 %v291, %v307
        %v324 = vld [vmem:[%s209 + $0x18] sm:$0xff]
        %v325 = vld [vmem:[%s209 + $0x58] sm:$0xff]
        %v326 = vld [vmem:[%s209 + $0x98] sm:$0xff]
        %v327 = vld [vmem:[%s209 + $0xd8] sm:$0xff]
        %v328 = vld [vmem:[%s209 + $0x118] sm:$0xff]
        %v329 = vld [vmem:[%s209 + $0x158] sm:$0xff]
        %v330 = vld [vmem:[%s209 + $0x198] sm:$0xff]
        %v331 = vld [vmem:[%s209 + $0x1d8] sm:$0xff]
        %v332 = vld [vmem:[%s209 + $0x218] sm:$0xff]
        %v333 = vld [vmem:[%s209 + $0x258] sm:$0xff]
        %v334 = vld [vmem:[%s209 + $0x298] sm:$0xff]
        %v335 = vld [vmem:[%s209 + $0x2d8] sm:$0xff]
        %v336 = vld [vmem:[%s209 + $0x318] sm:$0xff]
        %v337 = vld [vmem:[%s209 + $0x358] sm:$0xff]
        %v338 = vld [vmem:[%s209 + $0x398] sm:$0xff]
        %v339 = vld [vmem:[%s209 + $0x3d8] sm:$0xff]
        %v340 = vadd.f32 %v308, %v324
        %v341 = vadd.f32 %v309, %v325
        %v342 = vadd.f32 %v310, %v326
        %v343 = vadd.f32 %v311, %v327
        %v344 = vadd.f32 %v312, %v328
        %v345 = vadd.f32 %v313, %v329
        %v346 = vadd.f32 %v314, %v330
        %v347 = vadd.f32 %v315, %v331
        %v348 = vadd.f32 %v316, %v332
        %v349 = vadd.f32 %v317, %v333
        %v350 = vadd.f32 %v318, %v334
        %v351 = vadd.f32 %v319, %v335
        %v352 = vadd.f32 %v320, %v336
        %v353 = vadd.f32 %v321, %v337
        %v354 = vadd.f32 %v322, %v338
        %v355 = vadd.f32 %v323, %v339
        %v356 = vld [vmem:[%s209 + $0x20] sm:$0xff]
        %v357 = vld [vmem:[%s209 + $0x60] sm:$0xff]
        %v358 = vld [vmem:[%s209 + $0xa0] sm:$0xff]
        %v359 = vld [vmem:[%s209 + $0xe0] sm:$0xff]
        %v360 = vld [vmem:[%s209 + $0x120] sm:$0xff]
        %v361 = vld [vmem:[%s209 + $0x160] sm:$0xff]
        %v362 = vld [vmem:[%s209 + $0x1a0] sm:$0xff]
        %v363 = vld [vmem:[%s209 + $0x1e0] sm:$0xff]
        %v364 = vld [vmem:[%s209 + $0x220] sm:$0xff]
        %v365 = vld [vmem:[%s209 + $0x260] sm:$0xff]
        %v366 = vld [vmem:[%s209 + $0x2a0] sm:$0xff]
        %v367 = vld [vmem:[%s209 + $0x2e0] sm:$0xff]
        %v368 = vld [vmem:[%s209 + $0x320] sm:$0xff]
        %v369 = vld [vmem:[%s209 + $0x360] sm:$0xff]
        %v370 = vld [vmem:[%s209 + $0x3a0] sm:$0xff]
        %v371 = vld [vmem:[%s209 + $0x3e0] sm:$0xff]
        %v372 = vadd.f32 %v340, %v356
        %v373 = vadd.f32 %v341, %v357
        %v374 = vadd.f32 %v342, %v358
        %v375 = vadd.f32 %v343, %v359
        %v376 = vadd.f32 %v344, %v360
        %v377 = vadd.f32 %v345, %v361
        %v378 = vadd.f32 %v346, %v362
        %v379 = vadd.f32 %v347, %v363
        %v380 = vadd.f32 %v348, %v364
        %v381 = vadd.f32 %v349, %v365
        %v382 = vadd.f32 %v350, %v366
        %v383 = vadd.f32 %v351, %v367
        %v384 = vadd.f32 %v352, %v368
        %v385 = vadd.f32 %v353, %v369
        %v386 = vadd.f32 %v354, %v370
        %v387 = vadd.f32 %v355, %v371
        %v388 = vld [vmem:[%s209 + $0x28] sm:$0xff]
        %v389 = vld [vmem:[%s209 + $0x68] sm:$0xff]
        %v390 = vld [vmem:[%s209 + $0xa8] sm:$0xff]
        %v391 = vld [vmem:[%s209 + $0xe8] sm:$0xff]
        %v392 = vld [vmem:[%s209 + $0x128] sm:$0xff]
        %v393 = vld [vmem:[%s209 + $0x168] sm:$0xff]
        %v394 = vld [vmem:[%s209 + $0x1a8] sm:$0xff]
        %v395 = vld [vmem:[%s209 + $0x1e8] sm:$0xff]
        %v396 = vld [vmem:[%s209 + $0x228] sm:$0xff]
        %v397 = vld [vmem:[%s209 + $0x268] sm:$0xff]
        %v398 = vld [vmem:[%s209 + $0x2a8] sm:$0xff]
        %v399 = vld [vmem:[%s209 + $0x2e8] sm:$0xff]
        %v400 = vld [vmem:[%s209 + $0x328] sm:$0xff]
        %v401 = vld [vmem:[%s209 + $0x368] sm:$0xff]
        %v402 = vld [vmem:[%s209 + $0x3a8] sm:$0xff]
        %v403 = vld [vmem:[%s209 + $0x3e8] sm:$0xff]
        %v404 = vadd.f32 %v372, %v388
        %v405 = vadd.f32 %v373, %v389
        %v406 = vadd.f32 %v374, %v390
        %v407 = vadd.f32 %v375, %v391
        %v408 = vadd.f32 %v376, %v392
        %v409 = vadd.f32 %v377, %v393
        %v410 = vadd.f32 %v378, %v394
        %v411 = vadd.f32 %v379, %v395
        %v412 = vadd.f32 %v380, %v396
        %v413 = vadd.f32 %v381, %v397
        %v414 = vadd.f32 %v382, %v398
        %v415 = vadd.f32 %v383, %v399
        %v416 = vadd.f32 %v384, %v400
        %v417 = vadd.f32 %v385, %v401
        %v418 = vadd.f32 %v386, %v402
        %v419 = vadd.f32 %v387, %v403
        %v420 = vld [vmem:[%s209 + $0x30] sm:$0xff]
        %v421 = vld [vmem:[%s209 + $0x70] sm:$0xff]
        %v422 = vld [vmem:[%s209 + $0xb0] sm:$0xff]
        %v423 = vld [vmem:[%s209 + $0xf0] sm:$0xff]
        %v424 = vld [vmem:[%s209 + $0x130] sm:$0xff]
        %v425 = vld [vmem:[%s209 + $0x170] sm:$0xff]
        %v426 = vld [vmem:[%s209 + $0x1b0] sm:$0xff]
        %v427 = vld [vmem:[%s209 + $0x1f0] sm:$0xff]
        %v428 = vld [vmem:[%s209 + $0x230] sm:$0xff]
        %v429 = vld [vmem:[%s209 + $0x270] sm:$0xff]
        %v430 = vld [vmem:[%s209 + $0x2b0] sm:$0xff]
        %v431 = vld [vmem:[%s209 + $0x2f0] sm:$0xff]
        %v432 = vld [vmem:[%s209 + $0x330] sm:$0xff]
        %v433 = vld [vmem:[%s209 + $0x370] sm:$0xff]
        %v434 = vld [vmem:[%s209 + $0x3b0] sm:$0xff]
        %v435 = vld [vmem:[%s209 + $0x3f0] sm:$0xff]
        %v436 = vadd.f32 %v404, %v420
        %v437 = vadd.f32 %v405, %v421
        %v438 = vadd.f32 %v406, %v422
        %v439 = vadd.f32 %v407, %v423
        %v440 = vadd.f32 %v408, %v424
        %v441 = vadd.f32 %v409, %v425
        %v442 = vadd.f32 %v410, %v426
        %v443 = vadd.f32 %v411, %v427
        %v444 = vadd.f32 %v412, %v428
        %v445 = vadd.f32 %v413, %v429
        %v446 = vadd.f32 %v414, %v430
        %v447 = vadd.f32 %v415, %v431
        %v448 = vadd.f32 %v416, %v432
        %v449 = vadd.f32 %v417, %v433
        %v450 = vadd.f32 %v418, %v434
        %v451 = vadd.f32 %v419, %v435
        %v452 = vld [vmem:[%s209 + $0x38] sm:$0xff]
        %v453 = vld [vmem:[%s209 + $0x78] sm:$0xff]
        %v454 = vld [vmem:[%s209 + $0xb8] sm:$0xff]
        %v455 = vld [vmem:[%s209 + $0xf8] sm:$0xff]
        %v456 = vld [vmem:[%s209 + $0x138] sm:$0xff]
        %v457 = vld [vmem:[%s209 + $0x178] sm:$0xff]
        %v458 = vld [vmem:[%s209 + $0x1b8] sm:$0xff]
        %v459 = vld [vmem:[%s209 + $0x1f8] sm:$0xff]
        %v460 = vld [vmem:[%s209 + $0x238] sm:$0xff]
        %v461 = vld [vmem:[%s209 + $0x278] sm:$0xff]
        %v462 = vld [vmem:[%s209 + $0x2b8] sm:$0xff]
        %v463 = vld [vmem:[%s209 + $0x2f8] sm:$0xff]
        %v464 = vld [vmem:[%s209 + $0x338] sm:$0xff]
        %v465 = vld [vmem:[%s209 + $0x378] sm:$0xff]
        %v466 = vld [vmem:[%s209 + $0x3b8] sm:$0xff]
        %v467 = vld [vmem:[%s209 + $0x3f8] sm:$0xff]
        %v468 = vadd.f32 %v436, %v452
        %v469 = vadd.f32 %v437, %v453
        %v470 = vadd.f32 %v438, %v454
        %v471 = vadd.f32 %v439, %v455
        %v472 = vadd.f32 %v440, %v456
        %v473 = vadd.f32 %v441, %v457
        %v474 = vadd.f32 %v442, %v458
        %v475 = vadd.f32 %v443, %v459
        %v476 = vadd.f32 %v444, %v460
        %v477 = vadd.f32 %v445, %v461
        %v478 = vadd.f32 %v446, %v462
        %v479 = vadd.f32 %v447, %v463
        %v480 = vadd.f32 %v448, %v464
        %v481 = vadd.f32 %v449, %v465
        %v482 = vadd.f32 %v450, %v466
        %v483 = vadd.f32 %v451, %v467
        %484 = vadd.xlane.f32.xlu0 %v468
        %v485 = vpop.xlane.xlu0 %484
        %486 = vadd.xlane.f32.xlu0 %v469
        %v487 = vpop.xlane.xlu0 %486
        %488 = vadd.xlane.f32.xlu0 %v470
        %v489 = vpop.xlane.xlu0 %488
        %490 = vadd.xlane.f32.xlu0 %v471
        %v491 = vpop.xlane.xlu0 %490
        %492 = vadd.xlane.f32.xlu0 %v472
        %v493 = vpop.xlane.xlu0 %492
        %494 = vadd.xlane.f32.xlu0 %v473
        %v495 = vpop.xlane.xlu0 %494
        %496 = vadd.xlane.f32.xlu0 %v474
        %v497 = vpop.xlane.xlu0 %496
        %498 = vadd.xlane.f32.xlu0 %v475
        %v499 = vpop.xlane.xlu0 %498
        %500 = vadd.xlane.f32.xlu0 %v476
        %v501 = vpop.xlane.xlu0 %500
        %502 = vadd.xlane.f32.xlu0 %v477
        %v503 = vpop.xlane.xlu0 %502
        %504 = vadd.xlane.f32.xlu0 %v478
        %v505 = vpop.xlane.xlu0 %504
        %506 = vadd.xlane.f32.xlu0 %v479
        %v507 = vpop.xlane.xlu0 %506
        %508 = vadd.xlane.f32.xlu0 %v480
        %v509 = vpop.xlane.xlu0 %508
        %510 = vadd.xlane.f32.xlu0 %v481
        %v511 = vpop.xlane.xlu0 %510
        %512 = vadd.xlane.f32.xlu0 %v482
        %v513 = vpop.xlane.xlu0 %512
        %514 = vadd.xlane.f32.xlu0 %v483
        %v515 = vpop.xlane.xlu0 %514
        %v516 = vmul.f32 %v485, 0.0009765625
        %v517 = vmul.f32 %v487, 0.0009765625
        %v518 = vmul.f32 %v489, 0.0009765625
        %v519 = vmul.f32 %v491, 0.0009765625
        %v520 = vmul.f32 %v493, 0.0009765625
        %v521 = vmul.f32 %v495, 0.0009765625
        %v522 = vmul.f32 %v497, 0.0009765625
        %v523 = vmul.f32 %v499, 0.0009765625
        %v524 = vmul.f32 %v501, 0.0009765625
        %v525 = vmul.f32 %v503, 0.0009765625
        %v526 = vmul.f32 %v505, 0.0009765625
        %v527 = vmul.f32 %v507, 0.0009765625
        %v528 = vmul.f32 %v509, 0.0009765625
        %v529 = vmul.f32 %v511, 0.0009765625
        %v530 = vmul.f32 %v513, 0.0009765625
        %v531 = vmul.f32 %v515, 0.0009765625
        %v548 = vlaneseq
        %v549 = vand.u32 %v548, 127
        %v550 = vlaneseq
        %v551 = vshrl.u32 %v550, 7
        %v552 = vsub.s32 %v549, %v551
        %v553 = vrot.slane %v516, %v552
        %v554 = vadd.s32 %v549, 4294967288
        %v555 = vlaneseq
        %v556 = vshrl.u32 %v555, 7
        %v557 = vsub.s32 %v554, %v556
        %v558 = vrot.slane %v517, %v557
        %vm559 = vcmask 130112
        %v560 = vsel %vm559, %v558, %v553
        %v561 = vadd.s32 %v549, 4294967280
        %v562 = vlaneseq
        %v563 = vshrl.u32 %v562, 7
        %v564 = vsub.s32 %v561, %v563
        %v565 = vrot.slane %v518, %v564
        %vm566 = vcmask 195712
        %v567 = vsel %vm566, %v565, %v560
        %v568 = vadd.s32 %v549, 4294967272
        %v569 = vlaneseq
        %v570 = vshrl.u32 %v569, 7
        %v571 = vsub.s32 %v568, %v570
        %v572 = vrot.slane %v519, %v571
        %vm573 = vcmask 261312
        %v574 = vsel %vm573, %v572, %v567
        %v575 = vadd.s32 %v549, 4294967264
        %v576 = vlaneseq
        %v577 = vshrl.u32 %v576, 7
        %v578 = vsub.s32 %v575, %v577
        %v579 = vrot.slane %v520, %v578
        %vm580 = vcmask 326912
        %v581 = vsel %vm580, %v579, %v574
        %v582 = vadd.s32 %v549, 4294967256
        %v583 = vlaneseq
        %v584 = vshrl.u32 %v583, 7
        %v585 = vsub.s32 %v582, %v584
        %v586 = vrot.slane %v521, %v585
        %vm587 = vcmask 392512
        %v588 = vsel %vm587, %v586, %v581
        %v589 = vadd.s32 %v549, 4294967248
        %v590 = vlaneseq
        %v591 = vshrl.u32 %v590, 7
        %v592 = vsub.s32 %v589, %v591
        %v593 = vrot.slane %v522, %v592
        %vm594 = vcmask 458112
        %v595 = vsel %vm594, %v593, %v588
        %v596 = vadd.s32 %v549, 4294967240
        %v597 = vlaneseq
        %v598 = vshrl.u32 %v597, 7
        %v599 = vsub.s32 %v596, %v598
        %v600 = vrot.slane %v523, %v599
        %vm601 = vcmask 523712
        %v602 = vsel %vm601, %v600, %v595
        %v603 = vlaneseq
        %v604 = vshrl.u32 %v603, 7
        %v605 = vsub.s32 %v549, %v604
        %v606 = vrot.slane %v524, %v605
        %v607 = vlaneseq
        %v608 = vshrl.u32 %v607, 7
        %v609 = vsub.s32 %v554, %v608
        %v610 = vrot.slane %v525, %v609
        %v611 = vsel %vm559, %v610, %v606
        %v612 = vlaneseq
        %v613 = vshrl.u32 %v612, 7
        %v614 = vsub.s32 %v561, %v613
        %v615 = vrot.slane %v526, %v614
        %v616 = vsel %vm566, %v615, %v611
        %v617 = vlaneseq
        %v618 = vshrl.u32 %v617, 7
        %v619 = vsub.s32 %v568, %v618
        %v620 = vrot.slane %v527, %v619
        %v621 = vsel %vm573, %v620, %v616
        %v622 = vlaneseq
        %v623 = vshrl.u32 %v622, 7
        %v624 = vsub.s32 %v575, %v623
        %v625 = vrot.slane %v528, %v624
        %v626 = vsel %vm580, %v625, %v621
        %v627 = vlaneseq
        %v628 = vshrl.u32 %v627, 7
        %v629 = vsub.s32 %v582, %v628
        %v630 = vrot.slane %v529, %v629
        %v631 = vsel %vm587, %v630, %v626
        %v632 = vlaneseq
        %v633 = vshrl.u32 %v632, 7
        %v634 = vsub.s32 %v589, %v633
        %v635 = vrot.slane %v530, %v634
        %v636 = vsel %vm594, %v635, %v631
        %v637 = vlaneseq
        %v638 = vshrl.u32 %v637, 7
        %v639 = vsub.s32 %v596, %v638
        %v640 = vrot.slane %v531, %v639
        %v641 = vsel %vm601, %v640, %v636
        %vm642 = vcmask 1041409
        %v643 = vsel %vm642, %v641, %v602
        %vm645 = vcmask 517120
        %646 = vst.msk [vmem:[%s235] sm:$0x3] %vm645, %v643
        %v647 = vld [vmem:[#allocation5] sm:$0xff]
        %v648 = vld [vmem:[#allocation5 + $0x8] sm:$0xff]
        %v649 = vld [vmem:[#allocation5 + $0x10] sm:$0xff]
        %v650 = vld [vmem:[#allocation5 + $0x18] sm:$0xff]
        %v651 = vld [vmem:[#allocation5 + $0x20] sm:$0xff]
        %v652 = vld [vmem:[#allocation5 + $0x28] sm:$0xff]
        %v653 = vld [vmem:[#allocation5 + $0x30] sm:$0xff]
        %v654 = vld [vmem:[#allocation5 + $0x38] sm:$0xff]
        %v655 = vld [vmem:[%s2] sm:$0x1]
        %v657 = vlaneseq
        %v658 = vshrl.u32 %v657, 7
        %v659 = vsub.s32 0, %v658
        %v660 = vrot.slane %v655, %v659
        %vm662 = vcmask 523264
        %v663 = vsel %vm662, %v643, 0
        %665 = vmatprep.subr.mxu0 0.0
        %666 = vmatpush1.msra.mxu0 %v647
        %667 = vmatprep.subr.mxu0 0.0
        %668 = vmatpush1.msra.mxu0 %v648
        %669 = vmatprep.subr.mxu0 0.0
        %670 = vmatpush1.msra.mxu0 %v649
        %671 = vmatprep.subr.mxu0 0.0
        %672 = vmatpush1.msra.mxu0 %v650
        %673 = vmatprep.subr.mxu0 0.0
        %674 = vmatpush1.msra.mxu0 %v651
        %675 = vmatprep.subr.mxu0 0.0
        %676 = vmatpush1.msra.mxu0 %v652
        %677 = vmatprep.subr.mxu0 0.0
        %678 = vmatpush1.msra.mxu0 %v653
        %679 = vmatprep.subr.mxu0 0.0
        %680 = vmatpush1.msra.mxu0 %v654
        %681 = vmatprep.subr.mxu0 0.0
        %682 = vmatpush1.msra.mxu0 0.0
        %683 = vmatprep.subr.mxu0 0.0
        %684 = vmatpush1.msra.mxu0 0.0
        %685 = vmatprep.subr.mxu0 0.0
        %686 = vmatpush1.msra.mxu0 0.0
        %687 = vmatprep.subr.mxu0 0.0
        %688 = vmatpush1.msra.mxu0 0.0
        %689 = vmatprep.subr.mxu0 0.0
        %690 = vmatpush1.msra.mxu0 0.0
        %691 = vmatprep.subr.mxu0 0.0
        %692 = vmatpush1.msra.mxu0 0.0
        %693 = vmatprep.subr.mxu0 0.0
        %694 = vmatpush1.msra.mxu0 0.0
        %695 = vmatprep.subr.mxu0 0.0
        %696 = vmatpush1.msra.mxu0 0.0
        %697 = vmatprep.subr.mxu0 0.0
        %698 = vmatpush1.msra.mxu0 0.0
        %699 = vmatprep.subr.mxu0 0.0
        %700 = vmatpush1.msra.mxu0 0.0
        %701 = vmatprep.subr.mxu0 0.0
        %702 = vmatpush1.msra.mxu0 0.0
        %703 = vmatprep.subr.mxu0 0.0
        %704 = vmatpush1.msra.mxu0 0.0
        %705 = vmatprep.subr.mxu0 0.0
        %706 = vmatpush1.msra.mxu0 0.0
        %707 = vmatprep.subr.mxu0 0.0
        %708 = vmatpush1.msra.mxu0 0.0
        %709 = vmatprep.subr.mxu0 0.0
        %710 = vmatpush1.msra.mxu0 0.0
        %711 = vmatprep.subr.mxu0 0.0
        %712 = vmatpush1.msra.mxu0 0.0
        %713 = vmatprep.subr.mxu0 0.0
        %714 = vmatpush1.msra.mxu0 0.0
        %715 = vmatprep.subr.mxu0 0.0
        %716 = vmatpush1.msra.mxu0 0.0
        %717 = vmatprep.subr.mxu0 0.0
        %718 = vmatpush1.msra.mxu0 0.0
        %719 = vmatprep.subr.mxu0 0.0
        %720 = vmatpush1.msra.mxu0 0.0
        %721 = vmatprep.subr.mxu0 0.0
        %722 = vmatpush1.msra.mxu0 0.0
        %723 = vmatprep.subr.mxu0 0.0
        %724 = vmatpush1.msra.mxu0 0.0
        %725 = vmatprep.subr.mxu0 0.0
        %726 = vmatpush1.msra.mxu0 0.0
        %727 = vmatprep.subr.mxu0 0.0
        %728 = vmatpush1.msra.mxu0 0.0
        %729 = vmatprep.mubr.f32.mxu0 0.0
        %730 = vmatmul.mubr.f32.gmra.mrb[0].mxu0 %v663
        %v731 = vpop.f32.mrb[0].mxu0
        %v732 = vadd.f32 %v660, %v731
        %v733 = vpop.f32.mrb[0].mxu0
        %734 = vdwg.mxu0
        %735 = vst [vmem:[%s242] sm:$0x3] %v732
        %s736 = sand.u32 %s102, 1
        %s737 = scalar_lea.sflag [#allocation4], %s736
        %s738 = sand.u32 %s102, 1
        %s739 = smul.addr %s738, 2
        %s740 = scalar_lea.vmem [#allocation7], %s739
        %s741 = sand.u32 %s128, 1
        %s742 = scalar_lea.sflag [#allocation9], %s741
        %s743 = sand.u32 %s128, 1
        %s744 = smul.addr %s743, 2
        %s745 = scalar_lea.vmem [#allocation8], %s744
        // Predicated region
        $region41: #{tpu_custom_call.1} parent=31 // pred_check
          %p746 = pneg %p112
        $region42: #{tpu_custom_call.1} parent=31 // pred_check_branch
          %748 = sbr.rel (%p746) target = $region44
        $region43: #{tpu_custom_call.1} parent=31 // pred_region
          %s750 = ssub.s32 32, 32
          %751 = vsyncadd %s737, %s750
          %s752 = smul.addr %s26, 32
          %s753 = scalar_lea.hbm %s3, %s752
          %s755 = sshll.u32 %s740, 4
          %s756 = int_to_ptr.vmem [resolvable:$true] %s755
          %758 = dma.vmem_to_hbm [thread:$0]  %s756, 32, %s753, %s737
        $region44: #{tpu_custom_call.1} parent=31 // pred_fallthru
          _
        // Predicated region
        $region45: #{tpu_custom_call.1} parent=31 // pred_check
          %p759 = pneg %p138
        $region46: #{tpu_custom_call.1} parent=31 // pred_check_branch
          %761 = sbr.rel (%p759) target = $region48
        $region47: #{tpu_custom_call.1} parent=31 // pred_region
          %s763 = ssub.s32 32, 32
          %764 = vsyncadd %s742, %s763
          %s765 = smul.addr %s26, 32
          %s766 = scalar_lea.hbm %s4, %s765
          %s768 = sshll.u32 %s745, 4
          %s769 = int_to_ptr.vmem [resolvable:$true] %s768
          %771 = dma.vmem_to_hbm [thread:$0]  %s769, 32, %s766, %s742
        $region48: #{tpu_custom_call.1} parent=31 // pred_fallthru
          _
      $region32: #{tpu_custom_call.1} parent=5 // pred_fallthru
        _
      %p772 = scmp.le.s32.totalorder 2, %s21
      // Predicated region
      $region49: #{tpu_custom_call.1} parent=5 // pred_check
        %p773 = pneg %p772
      $region50: #{tpu_custom_call.1} parent=5 // pred_check_branch
        %775 = sbr.rel (%p773) target = $region52
      $region51: #{tpu_custom_call.1} parent=5 // pred_region
        %s776 = ssub.s32 %s21, 2
        // Predicated region
        $region53: #{tpu_custom_call.1} parent=51 // pred_check
          %p777 = pneg %p118
        $region54: #{tpu_custom_call.1} parent=51 // pred_check_branch
          %779 = sbr.rel (%p777) target = $region56
        $region55: #{tpu_custom_call.1} parent=51 // pred_region
          %s780 = sand.u32 %s103, 1
          %s781 = scalar_lea.sflag [#allocation4], %s780
          %s782 = sand.u32 %s103, 1
          %s783 = smul.addr %s782, 2
          %s784 = scalar_lea.vmem [#allocation7], %s783
          %785 = dma.done %s781, 32
        $region56: #{tpu_custom_call.1} parent=51 // pred_fallthru
          _
        // Predicated region
        $region57: #{tpu_custom_call.1} parent=51 // pred_check
          %p786 = pneg %p144
        $region58: #{tpu_custom_call.1} parent=51 // pred_check_branch
          %788 = sbr.rel (%p786) target = $region60
        $region59: #{tpu_custom_call.1} parent=51 // pred_region
          %s789 = sand.u32 %s129, 1
          %s790 = scalar_lea.sflag [#allocation9], %s789
          %s791 = sand.u32 %s129, 1
          %s792 = smul.addr %s791, 2
          %s793 = scalar_lea.vmem [#allocation8], %s792
          %794 = dma.done %s790, 32
        $region60: #{tpu_custom_call.1} parent=51 // pred_fallthru
          _
      $region52: #{tpu_custom_call.1} parent=5 // pred_fallthru
        _
    $region6: #{tpu_custom_call.1} parent=1 // loop_footer
      %s25 = sadd.s32 1, %s21
    $region7: #{tpu_custom_call.1} parent=1 // loop_footer_branch
      %20 = sbr.rel target = $region3
    $region8: #{tpu_custom_call.1} parent=1 // loop_exit
      _
    %795 = vsyncpa [#allocation3], 1
    %s796 = scalar_lea.sflag [#allocation3], 1
    %797 = vsyncpa %s796, 1
    %798 = vsyncpa [#allocation6], 1
    %799 = vsyncpa [#allocation4], 1
    %s800 = scalar_lea.sflag [#allocation4], 1
    %801 = vsyncpa %s800, 1
    %802 = vsyncpa [#allocation9], 1
    %s803 = scalar_lea.sflag [#allocation9], 1
    %804 = vsyncpa %s803, 1

</llo_original>
